<compile_context>
chip_gen: v7x
topology: tpu7x:2x2x1
jax: 0.10.0
libtpu: 0.0.40
codegen_flags: <defaults>
</compile_context>

<pallas_src>
import functools

import jax
import jax.numpy as jnp
from jax.experimental import pallas as pl
from jax.experimental.pallas import tpu as pltpu


def _fused_kernel(w_ref, b_ref, x_ref, o_ref, *, negative_slope, c_in):
    # w_ref: (C_out, C_in)  b_ref: (C_out, 1)  x_ref: (C_in, TM)  o_ref: (C_out, TM)
    x = x_ref[...] + 1.0                        # fused `x1 + ones_like(x1)`
    w = w_ref[...]
    # 3 broadcast FMAs on the VPU: (C_out,1) * (1,TM) -> (C_out,TM). No MXU.
    y = b_ref[...] + w[:, 0:1] * x[0:1, :]
    for ci in range(1, c_in):
        y = y + w[:, ci:ci + 1] * x[ci:ci + 1, :]
    # leaky-ReLU pattern from CustomModule
    o_ref[...] = jnp.where(y > 0, y, y * negative_slope).astype(o_ref.dtype)


@functools.partial(jax.jit, static_argnames=("negative_slope", "max_tm"))
def model_forward(x_nchw, weight_io, bias, negative_slope=0.25, *, max_tm=1024):
    """x_nchw: [N, C_in, H, W] f32.
    weight_io: [C_in, C_out] (PyTorch ConvTranspose2d weight [C_in, C_out, 1, 1]
    squeezed).  bias: [C_out]."""
    N, C_in, H, W = x_nchw.shape
    C_out = weight_io.shape[1]
    Ho, Wo = H - 2, W - 2                       # ConvTranspose2d(k=1, s=1, p=1) crop
    M = N * Ho * Wo

    # Single wrapper pass in: crop + channels-first + flatten -> [C_in, M].
    x_cm = jnp.transpose(x_nchw[:, :, 1:H - 1, 1:W - 1], (1, 0, 2, 3)).reshape(C_in, M)
    # Tiny parameter tiles in VPU-broadcast-friendly orientation.
    w_oc = weight_io.T                          # (C_out, C_in)
    b_oc = bias.reshape(C_out, 1)               # (C_out, 1)

    if M <= max_tm:
        tm, m_pad, x_in = M, M, x_cm            # one grid step, no activation padding
    else:
        tm = max_tm                             # multiple of 128 -> lane-dense tiles
        m_pad = ((M + tm - 1) // tm) * tm
        x_in = jnp.pad(x_cm, ((0, 0), (0, m_pad - M)))
    grid = (m_pad // tm,)

    out = pl.pallas_call(
        functools.partial(_fused_kernel, negative_slope=negative_slope, c_in=C_in),
        out_shape=jax.ShapeDtypeStruct((C_out, m_pad), jnp.float32),
        grid_spec=pltpu.PrefetchScalarGridSpec(
            num_scalar_prefetch=0,
            grid=grid,
            in_specs=[
                pl.BlockSpec((C_out, C_in), lambda i: (0, 0)),   # weights
                pl.BlockSpec((C_out, 1), lambda i: (0, 0)),      # bias
                pl.BlockSpec((C_in, tm), lambda i: (0, i)),      # activations
            ],
            out_specs=pl.BlockSpec((C_out, tm), lambda i: (0, i)),
        ),
        compiler_params=pltpu.CompilerParams(
            dimension_semantics=("parallel",)),
    )(w_oc, b_oc, x_in)

    # Single wrapper pass out: [C_out, M] -> [N, C_out, Ho, Wo]
    # (padded columns beyond M, if any, are sliced away here).
    y = out[:, :M].reshape(C_out, N, Ho, Wo)
    return jnp.transpose(y, (1, 0, 2, 3))


def reference_forward(x_nchw, weight_io, bias, negative_slope=0.25):
    """Plain-JAX reference of the same semantics (for sanity checking)."""
    x2 = x_nchw + 1.0
    x_crop = x2[:, :, 1:-1, 1:-1]
    y = jnp.einsum('nchw,co->nohw', x_crop, weight_io) + bias[None, :, None, None]
    return jnp.where(y > 0, y, y * negative_slope)


if __name__ == "__main__":
    key = jax.random.PRNGKey(0)
    kx, kw, kb = jax.random.split(key, 3)

    # Small shapes consistent with the module: N=2, C_in=3, C_out=8, H=W=16.
    N, C_in, C_out, H, W = 2, 3, 8, 16, 16
    x1 = jax.random.normal(kx, (N, C_in, H, W), dtype=jnp.float32)

    # Deterministic ConvTranspose2d(3, 8, 1) parameters.
    # PyTorch stores weight as [C_in, C_out, 1, 1]; kept here as [C_in, C_out].
    bound = 1.0 / (C_in ** 0.5)
    weight_io = jax.random.uniform(kw, (C_in, C_out), jnp.float32, -bound, bound)
    bias = jax.random.uniform(kb, (C_out,), jnp.float32, -bound, bound)

    out = model_forward(x1, weight_io, bias, negative_slope=0.25)
    out = jax.block_until_ready(out)

    ref = reference_forward(x1, weight_io, bias, negative_slope=0.25)
    assert out.shape == (N, C_out, H - 2, W - 2), out.shape
    assert jnp.allclose(out, ref, atol=1e-5, rtol=1e-5)

    print("KERNEL_OK")
</pallas_src>

<mosaic_0001>
module attributes {stable_mosaic.version = 11 : i64} {
  func.func @_fused_kernel(%arg0: i32, %arg1: memref<8x3xf32, #tpu.memory_space<vmem>>, %arg2: memref<8x1xf32, #tpu.memory_space<vmem>>, %arg3: memref<3x392xf32, #tpu.memory_space<vmem>>, %arg4: memref<8x392xf32, #tpu.memory_space<vmem>>) attributes {dimension_semantics = [#tpu.dimension_semantics<parallel>], iteration_bounds = array<i64: 1>, scalar_prefetch = 0 : i64, scratch_operands = 0 : i64, tpu.core_type = #tpu.core_type<tc>, window_params = [{pipeline_mode = #tpu.pipeline_mode<synchronous>, transform_indices = @transform_0, window_bounds = array<i64: 8, 3>}, {pipeline_mode = #tpu.pipeline_mode<synchronous>, transform_indices = @transform_1, window_bounds = array<i64: 8, 1>}, {transform_indices = @transform_2, window_bounds = array<i64: 3, 392>}, {transform_indices = @transform_3, window_bounds = array<i64: 8, 392>}]} {
    %c0 = arith.constant 0 : index
    %c0_0 = arith.constant 0 : index
    %0 = vector.load %arg3[%c0, %c0_0] : memref<3x392xf32, #tpu.memory_space<vmem>>, vector<3x392xf32>
    %cst = arith.constant 1.000000e+00 : f32
    %1 = vector.broadcast %cst : f32 to vector<3x392xf32>
    %2 = arith.addf %0, %1 : vector<3x392xf32>
    %c0_1 = arith.constant 0 : index
    %c0_2 = arith.constant 0 : index
    %3 = vector.load %arg1[%c0_1, %c0_2] : memref<8x3xf32, #tpu.memory_space<vmem>>, vector<8x3xf32>
    %c0_3 = arith.constant 0 : index
    %c0_4 = arith.constant 0 : index
    %4 = vector.load %arg2[%c0_3, %c0_4] : memref<8x1xf32, #tpu.memory_space<vmem>>, vector<8x1xf32>
    %5 = vector.extract_strided_slice %3 {offsets = [0, 0], sizes = [8, 1], strides = [1, 1]} : vector<8x3xf32> to vector<8x1xf32>
    %6 = vector.extract_strided_slice %2 {offsets = [0, 0], sizes = [1, 392], strides = [1, 1]} : vector<3x392xf32> to vector<1x392xf32>
    %7 = vector.broadcast %5 : vector<8x1xf32> to vector<8x392xf32>
    %8 = vector.broadcast %6 : vector<1x392xf32> to vector<8x392xf32>
    %9 = arith.mulf %7, %8 : vector<8x392xf32>
    %10 = vector.broadcast %4 : vector<8x1xf32> to vector<8x392xf32>
    %11 = arith.addf %10, %9 : vector<8x392xf32>
    %12 = vector.extract_strided_slice %3 {offsets = [0, 1], sizes = [8, 1], strides = [1, 1]} : vector<8x3xf32> to vector<8x1xf32>
    %13 = vector.extract_strided_slice %2 {offsets = [1, 0], sizes = [1, 392], strides = [1, 1]} : vector<3x392xf32> to vector<1x392xf32>
    %14 = vector.broadcast %12 : vector<8x1xf32> to vector<8x392xf32>
    %15 = vector.broadcast %13 : vector<1x392xf32> to vector<8x392xf32>
    %16 = arith.mulf %14, %15 : vector<8x392xf32>
    %17 = arith.addf %11, %16 : vector<8x392xf32>
    %18 = vector.extract_strided_slice %3 {offsets = [0, 2], sizes = [8, 1], strides = [1, 1]} : vector<8x3xf32> to vector<8x1xf32>
    %19 = vector.extract_strided_slice %2 {offsets = [2, 0], sizes = [1, 392], strides = [1, 1]} : vector<3x392xf32> to vector<1x392xf32>
    %20 = vector.broadcast %18 : vector<8x1xf32> to vector<8x392xf32>
    %21 = vector.broadcast %19 : vector<1x392xf32> to vector<8x392xf32>
    %22 = arith.mulf %20, %21 : vector<8x392xf32>
    %23 = arith.addf %17, %22 : vector<8x392xf32>
    %cst_5 = arith.constant 0.000000e+00 : f32
    %24 = vector.broadcast %cst_5 : f32 to vector<8x392xf32>
    %25 = arith.cmpf ogt, %23, %24 : vector<8x392xf32>
    %cst_6 = arith.constant 2.500000e-01 : f32
    %26 = vector.broadcast %cst_6 : f32 to vector<8x392xf32>
    %27 = arith.mulf %23, %26 : vector<8x392xf32>
    %28 = arith.select %25, %23, %27 : vector<8x392xi1>, vector<8x392xf32>
    %c0_7 = arith.constant 0 : index
    %c0_8 = arith.constant 0 : index
    %29 = vector.load %arg4[%c0_7, %c0_8] : memref<8x392xf32, #tpu.memory_space<vmem>>, vector<8x392xf32>
    tpu.vector_store %arg4[%c0_7, %c0_8], %28 {strides = array<i32>} : memref<8x392xf32, #tpu.memory_space<vmem>>, vector<8x392xf32>,
    return
  }
  func.func @transform_0(%arg0: i32) -> (i32, i32) {
    %c0_i32 = arith.constant 0 : i32
    %c0_i32_0 = arith.constant 0 : i32
    %c0_i32_1 = arith.constant 0 : i32
    return %c0_i32, %c0_i32_0 : i32, i32
  }
  func.func @transform_1(%arg0: i32) -> (i32, i32) {
    %c0_i32 = arith.constant 0 : i32
    %c0_i32_0 = arith.constant 0 : i32
    %c0_i32_1 = arith.constant 0 : i32
    return %c0_i32, %c0_i32_0 : i32, i32
  }
  func.func @transform_2(%arg0: i32) -> (i32, i32) {
    %c0_i32 = arith.constant 0 : i32
    %c0_i32_0 = arith.constant 0 : i32
    return %c0_i32, %arg0 : i32, i32
  }
  func.func @transform_3(%arg0: i32) -> (i32, i32) {
    %c0_i32 = arith.constant 0 : i32
    %c0_i32_0 = arith.constant 0 : i32
    return %c0_i32, %arg0 : i32, i32
  }
}

</mosaic_0001>

<llo_original>
// kernel: model_forward.1
$region0: #{model_forward.1}
  #allocation0 [shape = 'u32[]', space=smem, size = 0x4, offset = 0x4, fixed_abs, tag = 'smem constant byte address 0x4 - core index']
  #allocation1 [shape = 'u32[144,128]{1,0:T(1,128)}', space=vmem, size = 0x12000, scoped, tag = 'internal scratch']
  %s0 = inlined_call_operand.vmem [shape: f32[8,3], index: 0, kind: input, shape index: {}]
  %s1 = inlined_call_operand.vmem [shape: f32[8,1], index: 1, kind: input, shape index: {}]
  %s2 = inlined_call_operand.vmem [shape: f32[3,392], index: 2, kind: input, shape index: {}]
  %s3 = inlined_call_operand.vmem [shape: f32[8,392], index: 3, kind: output, shape index: {}]
  %s4 = sld [smem:[#allocation0]]
  $region22: #{model_forward.1} parent=0
    _
  %s6 = ssub.s32 1, %s4
  %s7 = scalar_select 0, %s6, %s4
  // Predicated region
  $region2: #{model_forward.1} parent=0 // pred_check
    _
  $region3: #{model_forward.1} parent=0 // pred_check_branch
    %9 = sbr.rel (0) target = $region5
  $region4: #{model_forward.1} parent=0 // pred_region
    _
  $region5: #{model_forward.1} parent=0 // pred_fallthru
    _
  // Predicated region
  $region6: #{model_forward.1} parent=0 // pred_check
    _
  $region7: #{model_forward.1} parent=0 // pred_check_branch
    %11 = sbr.rel (0) target = $region9
  $region8: #{model_forward.1} parent=0 // pred_region
    _
  $region9: #{model_forward.1} parent=0 // pred_fallthru
    _
  // Predicated region
  $region10: #{model_forward.1} parent=0 // pred_check
    _
  $region11: #{model_forward.1} parent=0 // pred_check_branch
    %13 = sbr.rel (0) target = $region13
  $region12: #{model_forward.1} parent=0 // pred_region
    _
  $region13: #{model_forward.1} parent=0 // pred_fallthru
    _
  %v14 = vld [vmem:[%s2] sm:$0x77]
  %v15 = vld [vmem:[%s2 + $0x8] sm:$0x77]
  %v16 = vadd.f32 %v14, 1.0
  %v17 = vadd.f32 %v15, 1.0
  %v18 = vld [vmem:[%s0] sm:$0xff]
  %v19 = vld [vmem:[%s1] sm:$0xff]
  %21 = vset.pattern.permute.xlu0 0
  %22 = vperm.xlu0 %21, %v18
  %v23 = vpop.permute.xlu0 %22
  %v27 = vlaneseq
  %v28 = vshrl.u32 %v27, 7
  %v29 = vsub.s32 0, %v28
  %v30 = vrot.slane %v16, %v29
  %v31 = vlaneseq
  %v32 = vshrl.u32 %v31, 7
  %v33 = vsub.s32 4, %v32
  %v34 = vrot.slane %v16, %v33
  %v35 = vlaneseq
  %v36 = vshrl.u32 %v35, 7
  %v37 = vsub.s32 0, %v36
  %v38 = vrot.slane %v17, %v37
  %v39 = vlaneseq
  %v40 = vshrl.u32 %v39, 7
  %v41 = vsub.s32 4, %v40
  %v42 = vrot.slane %v17, %v41
  %v47 = vlaneseq
  %v48 = vshrl.u32 %v47, 7
  %v49 = vsub.s32 0, %v48
  %v50 = vrot.slane %v30, %v49
  %v51 = vlaneseq
  %v52 = vshrl.u32 %v51, 7
  %v53 = vsub.s32 0, %v52
  %v54 = vrot.slane %v34, %v53
  %v55 = vlaneseq
  %v56 = vshrl.u32 %v55, 7
  %v57 = vsub.s32 0, %v56
  %v58 = vrot.slane %v38, %v57
  %v59 = vlaneseq
  %v60 = vshrl.u32 %v59, 7
  %v61 = vsub.s32 0, %v60
  %v62 = vrot.slane %v42, %v61
  %v63 = vmul.f32 %v23, %v50
  %v64 = vmul.f32 %v23, %v54
  %v65 = vmul.f32 %v23, %v58
  %v66 = vmul.f32 %v23, %v62
  %68 = vset.pattern.permute.xlu0 0
  %69 = vperm.xlu0 %68, %v19
  %v70 = vpop.permute.xlu0 %69
  %v72 = vadd.f32 %v70, %v63
  %v73 = vadd.f32 %v70, %v64
  %v74 = vadd.f32 %v70, %v65
  %v75 = vadd.f32 %v70, %v66
  %76 = vset.pattern.permute.xlu0 1
  %77 = vperm.xlu0 %76, %v18
  %v78 = vpop.permute.xlu0 %77
  %v80 = vlaneseq
  %v81 = vshrl.u32 %v80, 7
  %v82 = vsub.s32 1, %v81
  %v83 = vrot.slane %v16, %v82
  %v84 = vlaneseq
  %v85 = vshrl.u32 %v84, 7
  %v86 = vsub.s32 5, %v85
  %v87 = vrot.slane %v16, %v86
  %v88 = vlaneseq
  %v89 = vshrl.u32 %v88, 7
  %v90 = vsub.s32 1, %v89
  %v91 = vrot.slane %v17, %v90
  %v92 = vlaneseq
  %v93 = vshrl.u32 %v92, 7
  %v94 = vsub.s32 5, %v93
  %v95 = vrot.slane %v17, %v94
  %v100 = vlaneseq
  %v101 = vshrl.u32 %v100, 7
  %v102 = vsub.s32 1, %v101
  %v103 = vrot.slane %v83, %v102
  %v104 = vlaneseq
  %v105 = vshrl.u32 %v104, 7
  %v106 = vsub.s32 1, %v105
  %v107 = vrot.slane %v87, %v106
  %v108 = vlaneseq
  %v109 = vshrl.u32 %v108, 7
  %v110 = vsub.s32 1, %v109
  %v111 = vrot.slane %v91, %v110
  %v112 = vlaneseq
  %v113 = vshrl.u32 %v112, 7
  %v114 = vsub.s32 1, %v113
  %v115 = vrot.slane %v95, %v114
  %v116 = vmul.f32 %v78, %v103
  %v117 = vmul.f32 %v78, %v107
  %v118 = vmul.f32 %v78, %v111
  %v119 = vmul.f32 %v78, %v115
  %v120 = vadd.f32 %v72, %v116
  %v121 = vadd.f32 %v73, %v117
  %v122 = vadd.f32 %v74, %v118
  %v123 = vadd.f32 %v75, %v119
  %124 = vset.pattern.permute.xlu0 2
  %125 = vperm.xlu0 %124, %v18
  %v126 = vpop.permute.xlu0 %125
  %v128 = vlaneseq
  %v129 = vshrl.u32 %v128, 7
  %v130 = vsub.s32 2, %v129
  %v131 = vrot.slane %v16, %v130
  %v132 = vlaneseq
  %v133 = vshrl.u32 %v132, 7
  %v134 = vsub.s32 6, %v133
  %v135 = vrot.slane %v16, %v134
  %v136 = vlaneseq
  %v137 = vshrl.u32 %v136, 7
  %v138 = vsub.s32 2, %v137
  %v139 = vrot.slane %v17, %v138
  %v140 = vlaneseq
  %v141 = vshrl.u32 %v140, 7
  %v142 = vsub.s32 6, %v141
  %v143 = vrot.slane %v17, %v142
  %v148 = vlaneseq
  %v149 = vshrl.u32 %v148, 7
  %v150 = vsub.s32 2, %v149
  %v151 = vrot.slane %v131, %v150
  %v152 = vlaneseq
  %v153 = vshrl.u32 %v152, 7
  %v154 = vsub.s32 2, %v153
  %v155 = vrot.slane %v135, %v154
  %v156 = vlaneseq
  %v157 = vshrl.u32 %v156, 7
  %v158 = vsub.s32 2, %v157
  %v159 = vrot.slane %v139, %v158
  %v160 = vlaneseq
  %v161 = vshrl.u32 %v160, 7
  %v162 = vsub.s32 2, %v161
  %v163 = vrot.slane %v143, %v162
  %v164 = vmul.f32 %v126, %v151
  %v165 = vmul.f32 %v126, %v155
  %v166 = vmul.f32 %v126, %v159
  %v167 = vmul.f32 %v126, %v163
  %v168 = vadd.f32 %v120, %v164
  %v169 = vadd.f32 %v121, %v165
  %v170 = vadd.f32 %v122, %v166
  %v171 = vadd.f32 %v123, %v167
  %vm172 = vcmp.gt.f32.partialorder %v168, 0.0
  %vm173 = vcmp.gt.f32.partialorder %v169, 0.0
  %vm174 = vcmp.gt.f32.partialorder %v170, 0.0
  %vm175 = vcmp.gt.f32.partialorder %v171, 0.0
  %v176 = vmul.f32 %v168, 0.25
  %v177 = vmul.f32 %v169, 0.25
  %v178 = vmul.f32 %v170, 0.25
  %v179 = vmul.f32 %v171, 0.25
  %v180 = vsel %vm172, %v168, %v176
  %v181 = vsel %vm173, %v169, %v177
  %v182 = vsel %vm174, %v170, %v178
  %v183 = vsel %vm175, %v171, %v179
  %184 = vst [vmem:[%s3] sm:$0xff] %v180
  %185 = vst [vmem:[%s3 + $0x8] sm:$0xff] %v181
  %186 = vst [vmem:[%s3 + $0x10] sm:$0xff] %v182
  %vm187 = vcmask 64512
  %188 = vst.msk [vmem:[%s3 + $0x18] sm:$0xff] %vm187, %v183
  // Predicated region
  $region14: #{model_forward.1} parent=0 // pred_check
    _
  $region15: #{model_forward.1} parent=0 // pred_check_branch
    %190 = sbr.rel (0) target = $region17
  $region16: #{model_forward.1} parent=0 // pred_region
    _
  $region17: #{model_forward.1} parent=0 // pred_fallthru
    _
  // Predicated region
  $region18: #{model_forward.1} parent=0 // pred_check
    _
  $region19: #{model_forward.1} parent=0 // pred_check_branch
    %192 = sbr.rel (0) target = $region21
  $region20: #{model_forward.1} parent=0 // pred_region
    _
  $region21: #{model_forward.1} parent=0 // pred_fallthru
    _

</llo_original>
